<compile_context>
chip_gen: v6e
topology: v6e:2x2x1
jax: 0.10.0
libtpu: 0.0.40
codegen_flags: <defaults>
</compile_context>

<pallas_src>
import math

import jax
import jax.numpy as jnp
from jax.experimental import pallas as pl
from jax.experimental.pallas import tpu as pltpu

# ----------------------------- dimensions -----------------------------------
BS = 8                       # batch (fills a sublane tile)
C_IMG, H_IMG, W_IMG = 1, 8, 8
V_DIM = C_IMG * H_IMG * W_IMG  # 64
H_DIM = 16                   # latent h
W_DIM = 8                    # latent w
HID = 32                     # MLP hidden width
K = 4                        # n_classes
M = 1                        # particles (forward() -> ELBO(M=1))

LOG_2PI = math.log(2.0 * math.pi)
LOG_K = math.log(float(K))

# -------------------- packed parameter buffer layout -------------------------
# One (P_ROWS, 128) f32 buffer; every weight block starts at lane 0 and at a row
# offset that is a multiple of 8.
LANES = 128
R_ENC1 = 0                       # (2*HID=64 rows, 0:64)   [qh_w1 | qw_w1]
R_QHEAD = R_ENC1 + 2 * HID       # (64 rows, 0:48)         block-diag q heads
R_PHW = R_QHEAD + 2 * HID        # (W_DIM=8 rows, 0:128)   ph_w1 (w part), K-tiled
R_PHBIG = R_PHW + W_DIM          # (K*HID=128 rows, 0:128) block-diag p(h|w,c) heads
R_PV1 = R_PHBIG + K * HID        # (H_DIM=16 rows, 0:HID)  decoder layer 1
R_PV2 = R_PV1 + H_DIM            # (HID=32 rows, 0:V_DIM)  decoder layer 2
R_SEG = R_PV2 + HID              # (2*K*H_DIM=128 rows, 0:2K) fused 0/1 segment matrix
R_BIAS = R_SEG + 2 * K * H_DIM   # 8 bias rows
P_ROWS = R_BIAS + 8              # 448

B_ENC1 = R_BIAS + 0              # (1, 0:64)  [qh_b1 | qw_b1]
B_QHEAD = R_BIAS + 1             # (1, 0:48)  [qh_bm | qh_bstd | qw_bm | qw_bstd]
B_PHC = R_BIAS + 2               # (1, 0:128) tile(ph_b1,K) + class-embedding rows
B_PHBIG = R_BIAS + 3             # (1, 0:128) [tile(ph_bm,K) | tile(ph_bstd,K)]
B_PV1 = R_BIAS + 4               # (1, 0:HID) pv_b1
B_PV2 = R_BIAS + 5               # (1, 0:V_DIM) pv_b2

DATA_COLS = 128                  # [x (0:64) | eps_h (64:80) | eps_w (80:88)]


# ------------------------------- kernel -------------------------------------
def gmvae_elbo_kernel(data_ref, p_ref, out_ref):
    f32 = jnp.float32

    def dot(a, b):
        return jnp.dot(a, b, preferred_element_type=f32)

    x = data_ref[:, 0:V_DIM]                                    # (R, 64) targets in [0,1]
    eps_h = data_ref[:, V_DIM:V_DIM + H_DIM]                    # (R, 16)
    eps_w = data_ref[:, V_DIM + H_DIM:V_DIM + H_DIM + W_DIM]    # (R, 8)

    # ---- Q: both encoder layer-1s fused into one matmul ---------------------
    enc1_w = p_ref[R_ENC1:R_ENC1 + 2 * HID, 0:2 * HID]          # (64, 64)
    enc1_b = p_ref[B_ENC1:B_ENC1 + 1, 0:2 * HID]                # (1, 64)
    enc_hid = jnp.tanh(dot(x, enc1_w) + enc1_b)                 # (R, 64) [qh_hid | qw_hid]

    # ---- Q: the four mean/logstd heads fused (block-diagonal) ----------------
    qhd_w = p_ref[R_QHEAD:R_QHEAD + 2 * HID, 0:2 * H_DIM + 2 * W_DIM]   # (64, 48)
    qhd_b = p_ref[B_QHEAD:B_QHEAD + 1, 0:2 * H_DIM + 2 * W_DIM]         # (1, 48)
    heads = dot(enc_hid, qhd_w) + qhd_b                         # (R, 48)
    h_mean = heads[:, 0:H_DIM]
    h_logstd = heads[:, H_DIM:2 * H_DIM]
    w_mean = heads[:, 2 * H_DIM:2 * H_DIM + W_DIM]
    w_logstd = heads[:, 2 * H_DIM + W_DIM:2 * H_DIM + 2 * W_DIM]

    h_sample = h_mean + jnp.exp(h_logstd) * eps_h               # (R, 16)
    w_sample = w_mean + jnp.exp(w_logstd) * eps_w               # (R, 8)

    # ---- P.gen_h for all K classes, lane-packed -------------------------------
    # Weight is pre-tiled K times along lanes; class embedding rows + tiled bias
    # are a single (1, 128) additive row -> one matmul, one add, one tanh.
    ph_w1t = p_ref[R_PHW:R_PHW + W_DIM, 0:K * HID]              # (8, 128)
    ph_b1t = p_ref[B_PHC:B_PHC + 1, 0:K * HID]                  # (1, 128)
    ph_hid = jnp.tanh(dot(w_sample, ph_w1t) + ph_b1t)           # (R, 128)

    ph_big_w = p_ref[R_PHBIG:R_PHBIG + K * HID, 0:2 * K * H_DIM]       # (128, 128)
    ph_big_b = p_ref[B_PHBIG:B_PHBIG + 1, 0:2 * K * H_DIM]             # (1, 128)
    h_wc = dot(ph_hid, ph_big_w) + ph_big_b                     # (R, 128)
    mean_all = h_wc[:, 0:K * H_DIM]                             # (R, 64) = K blocks of 16
    logstd_all = h_wc[:, K * H_DIM:2 * K * H_DIM]               # (R, 64)
    inv_var = jnp.exp(-2.0 * logstd_all)                        # reused by log-lik & kl_h

    # ---- P.gen_v: decoder logits ---------------------------------------------
    pv_w1 = p_ref[R_PV1:R_PV1 + H_DIM, 0:HID]                   # (16, 32)
    pv_b1 = p_ref[B_PV1:B_PV1 + 1, 0:HID]
    pv_w2 = p_ref[R_PV2:R_PV2 + HID, 0:V_DIM]                   # (32, 64)
    pv_b2 = p_ref[B_PV2:B_PV2 + 1, 0:V_DIM]
    gv_hid = jnp.tanh(dot(h_sample, pv_w1) + pv_b1)             # (R, 32)
    logits = dot(gv_hid, pv_w2) + pv_b2                         # (R, 64)

    # ---- recon (bernoulli): stable BCE-with-logits, sum over features --------
    bce = (jnp.maximum(logits, 0.0) - logits * x
           + jnp.log1p(jnp.exp(-jnp.abs(logits))))
    recon = jnp.sum(bce, axis=-1, keepdims=True)                # (R, 1)

    # ---- lane-tiled h quantities (K blocks of H_DIM along lanes) -------------
    h_tile = jnp.concatenate([h_sample] * K, axis=-1)           # (R, 64)
    q_mu_t = jnp.concatenate([h_mean] * K, axis=-1)             # (R, 64)
    q_ls_t = jnp.concatenate([h_logstd] * K, axis=-1)           # (R, 64)
    e2_t = jnp.exp(2.0 * q_ls_t)                                # (R, 64)

    # Gaussian log-lik terms of h under each class (the constant -0.5*D*log 2pi
    # is identical across classes and cancels in the softmax -> dropped), and
    # the per-class KL(q(h|x) || p(h|w,c)) terms.
    ll_terms = (h_tile - mean_all) ** 2 * inv_var + 2.0 * logstd_all
    kl_terms = (e2_t * inv_var - 1.0 - 2.0 * q_ls_t + 2.0 * logstd_all
                + (q_mu_t - mean_all) ** 2 * inv_var)

    # ---- both per-class reductions in ONE matmul against a 0/1 block matrix --
    seg2 = p_ref[R_SEG:R_SEG + 2 * K * H_DIM, 0:2 * K]          # (128, 8)
    red = dot(jnp.concatenate([ll_terms, kl_terms], axis=-1), seg2)   # (R, 8)
    log_lik = -0.5 * red[:, 0:K]                                # (R, K)
    kl_h_k = 0.5 * red[:, K:2 * K]                              # (R, K)

    # ---- P.infer_c: softmax over the class log-likelihoods -------------------
    log_lik = log_lik - jnp.max(log_lik, axis=-1, keepdims=True)
    unnorm = jnp.exp(log_lik)
    denom = jnp.sum(unnorm, axis=-1, keepdims=True)
    prob_c = unnorm * pl.reciprocal(denom, approx=True)         # (R, K)

    # ---- kl_c -----------------------------------------------------------------
    kl_c = jnp.sum(prob_c * (jnp.log(prob_c + 1e-10) + LOG_K),
                   axis=-1, keepdims=True)                      # (R, 1)

    # ---- kl_w -----------------------------------------------------------------
    kl_w = jnp.sum(-w_logstd + (jnp.exp(2.0 * w_logstd) + w_mean ** 2 - 1.0) * 0.5,
                   axis=-1, keepdims=True)                      # (R, 1)

    # ---- kl_h -----------------------------------------------------------------
    kl_h = jnp.sum(kl_h_k * prob_c, axis=-1, keepdims=True)     # (R, 1)

    # mean over rows (= M*BS) reproduces torch.mean over batch of the M-averaged loss
    loss = jnp.mean(recon + kl_c + kl_h + kl_w)
    out_ref[...] = jnp.broadcast_to(jnp.reshape(loss, (1, 1)), (1, LANES))


# ------------------------------- wrapper -------------------------------------
@jax.jit
def gmvae_elbo(x_nchw, eps_h, eps_w, packed_params):
    m, bs = eps_h.shape[0], eps_h.shape[1]
    rows = m * bs
    x_flat = x_nchw.reshape(bs, -1).astype(jnp.float32)          # (BS, V_DIM)
    x_rep = jnp.tile(x_flat, (m, 1))                             # (M*BS, V_DIM)

    data = jnp.zeros((rows, DATA_COLS), jnp.float32)
    data = data.at[:, 0:V_DIM].set(x_rep)
    data = data.at[:, V_DIM:V_DIM + H_DIM].set(eps_h.reshape(rows, H_DIM))
    data = data.at[:, V_DIM + H_DIM:V_DIM + H_DIM + W_DIM].set(eps_w.reshape(rows, W_DIM))

    vmem = pl.BlockSpec(memory_space=pltpu.MemorySpace.VMEM)
    loss = pl.pallas_call(
        gmvae_elbo_kernel,
        out_shape=jax.ShapeDtypeStruct((1, LANES), jnp.float32),
        in_specs=[vmem, vmem],
        out_specs=vmem,
        compiler_params=pltpu.CompilerParams(vmem_limit_bytes=4 << 20),
    )(data, packed_params)
    return loss[0, 0]


# --------------------------- parameter building ------------------------------
def init_linear(key, fan_in, fan_out):
    """PyTorch nn.Linear-style uniform init: U(-1/sqrt(fan_in), 1/sqrt(fan_in))."""
    kw, kb = jax.random.split(key)
    bound = 1.0 / jnp.sqrt(jnp.float32(fan_in))
    w = jax.random.uniform(kw, (fan_in, fan_out), jnp.float32, -bound, bound)
    b = jax.random.uniform(kb, (1, fan_out), jnp.float32, -bound, bound)
    return w, b


def build_params(key):
    keys = jax.random.split(key, 11)
    # Q.infer_h : v -> hid -> (h_mean, h_logstd)
    qh_w1, qh_b1 = init_linear(keys[0], V_DIM, HID)
    qh_wm, qh_bm = init_linear(keys[1], HID, H_DIM)
    qh_ws, qh_bstd = init_linear(keys[2], HID, H_DIM)
    # Q.infer_w : v -> hid -> (w_mean, w_logstd)
    qw_w1, qw_b1 = init_linear(keys[3], V_DIM, HID)
    qw_wm, qw_bm = init_linear(keys[4], HID, W_DIM)
    qw_ws, qw_bstd = init_linear(keys[5], HID, W_DIM)
    # P.gen_h : [w, onehot(c)] -> hid -> (h_mean, h_logstd)
    ph_w1, ph_b1 = init_linear(keys[6], W_DIM + K, HID)
    ph_wm, ph_bm = init_linear(keys[7], HID, H_DIM)
    ph_ws, ph_bstd = init_linear(keys[8], HID, H_DIM)
    # P.gen_v : h -> hid -> v logits
    pv_w1, pv_b1 = init_linear(keys[9], H_DIM, HID)
    pv_w2, pv_b2 = init_linear(keys[10], HID, V_DIM)
    return (qh_w1, qh_b1, qh_wm, qh_bm, qh_ws, qh_bstd,
            qw_w1, qw_b1, qw_wm, qw_bm, qw_ws, qw_bstd,
            ph_w1, ph_b1, ph_wm, ph_bm, ph_ws, ph_bstd,
            pv_w1, pv_b1, pv_w2, pv_b2)


def pack_params(params):
    """Pack all layer weights/biases into one (P_ROWS, 128) f32 buffer."""
    (qh_w1, qh_b1, qh_wm, qh_bm, qh_ws, qh_bstd,
     qw_w1, qw_b1, qw_wm, qw_bm, qw_ws, qw_bstd,
     ph_w1, ph_b1, ph_wm, ph_bm, ph_ws, ph_bstd,
     pv_w1, pv_b1, pv_w2, pv_b2) = params

    P = jnp.zeros((P_ROWS, LANES), jnp.float32)

    # fused encoder layer-1: [qh_w1 | qw_w1]
    P = P.at[R_ENC1:R_ENC1 + V_DIM, 0:2 * HID].set(
        jnp.concatenate([qh_w1, qw_w1], axis=1))

    # fused Q heads: block-diagonal (64, 48)
    q_head = jnp.zeros((2 * HID, 2 * H_DIM + 2 * W_DIM), jnp.float32)
    q_head = q_head.at[0:HID, 0:H_DIM].set(qh_wm)
    q_head = q_head.at[0:HID, H_DIM:2 * H_DIM].set(qh_ws)
    q_head = q_head.at[HID:2 * HID, 2 * H_DIM:2 * H_DIM + W_DIM].set(qw_wm)
    q_head = q_head.at[HID:2 * HID, 2 * H_DIM + W_DIM:2 * H_DIM + 2 * W_DIM].set(qw_ws)
    P = P.at[R_QHEAD:R_QHEAD + 2 * HID, 0:2 * H_DIM + 2 * W_DIM].set(q_head)

    # p(h|w,c): w-part of layer-1, pre-tiled K times along lanes -> (8, 128)
    P = P.at[R_PHW:R_PHW + W_DIM, 0:K * HID].set(jnp.tile(ph_w1[:W_DIM], (1, K)))

    # p(h|w,c) heads: block-diagonal (128, 128) producing [all means | all logstds]
    ph_big = jnp.zeros((K * HID, 2 * K * H_DIM), jnp.float32)
    for k in range(K):
        ph_big = ph_big.at[k * HID:(k + 1) * HID, k * H_DIM:(k + 1) * H_DIM].set(ph_wm)
        ph_big = ph_big.at[k * HID:(k + 1) * HID,
                           K * H_DIM + k * H_DIM:K * H_DIM + (k + 1) * H_DIM].set(ph_ws)
    P = P.at[R_PHBIG:R_PHBIG + K * HID, 0:2 * K * H_DIM].set(ph_big)

    # decoder
    P = P.at[R_PV1:R_PV1 + H_DIM, 0:HID].set(pv_w1)
    P = P.at[R_PV2:R_PV2 + HID, 0:V_DIM].set(pv_w2)

    # fused 0/1 segment-sum matrix: (128, 8)
    #   rows 0:64   -> cols 0:4 (log-lik blocks), rows 64:128 -> cols 4:8 (kl_h blocks)
    seg = (jnp.arange(K * H_DIM)[:, None] // H_DIM
           == jnp.arange(K)[None, :]).astype(jnp.float32)       # (64, 4)
    seg2 = jnp.zeros((2 * K * H_DIM, 2 * K), jnp.float32)
    seg2 = seg2.at[0:K * H_DIM, 0:K].set(seg)
    seg2 = seg2.at[K * H_DIM:2 * K * H_DIM, K:2 * K].set(seg)
    P = P.at[R_SEG:R_SEG + 2 * K * H_DIM, 0:2 * K].set(seg2)

    # biases (one per row)
    P = P.at[B_ENC1, 0:2 * HID].set(jnp.concatenate([qh_b1[0], qw_b1[0]]))
    P = P.at[B_QHEAD, 0:2 * H_DIM + 2 * W_DIM].set(
        jnp.concatenate([qh_bm[0], qh_bstd[0], qw_bm[0], qw_bstd[0]]))
    # tiled ph_b1 plus the class-embedding rows of ph_w1 (one additive row)
    P = P.at[B_PHC, 0:K * HID].set(jnp.tile(ph_b1[0], K) + ph_w1[W_DIM:].reshape(-1))
    P = P.at[B_PHBIG, 0:K * H_DIM].set(jnp.tile(ph_bm[0], K))
    P = P.at[B_PHBIG, K * H_DIM:2 * K * H_DIM].set(jnp.tile(ph_bstd[0], K))
    P = P.at[B_PV1, 0:HID].set(pv_b1[0])
    P = P.at[B_PV2, 0:V_DIM].set(pv_b2[0])
    return P


if __name__ == "__main__":
    root = jax.random.PRNGKey(0)
    k_x, k_eh, k_ew, k_p = jax.random.split(root, 4)

    # NCHW input in [0, 1] (bernoulli targets).
    x = jax.random.uniform(k_x, (BS, C_IMG, H_IMG, W_IMG), jnp.float32)
    # Reparameterization noise for the M=1 particle of h and w.
    eps_h = jax.random.normal(k_eh, (M, BS, H_DIM), jnp.float32)
    eps_w = jax.random.normal(k_ew, (M, BS, W_DIM), jnp.float32)

    params = build_params(k_p)
    packed = pack_params(params)

    loss = gmvae_elbo(x, eps_h, eps_w, packed)
    loss = jax.block_until_ready(loss)
    assert loss.shape == () and jnp.isfinite(loss), loss
    print("KERNEL_OK")
</pallas_src>

<mosaic_0001>
module attributes {stable_mosaic.version = 11 : i64} {
  func.func @gmvae_elbo_kernel(%arg0: memref<8x128xf32, #tpu.memory_space<vmem>>, %arg1: memref<448x128xf32, #tpu.memory_space<vmem>>, %arg2: memref<1x128xf32, #tpu.memory_space<vmem>>) attributes {dimension_semantics = [], scalar_prefetch = 0 : i64, scratch_operands = 0 : i64, tpu.core_type = #tpu.core_type<tc>} {
    %c0 = arith.constant 0 : index
    %c0_0 = arith.constant 0 : index
    %0 = vector.load %arg0[%c0, %c0_0] : memref<8x128xf32, #tpu.memory_space<vmem>>, vector<8x64xf32>
    %c0_1 = arith.constant 0 : index
    %c64 = arith.constant 64 : index
    %1 = vector.load %arg0[%c0_1, %c64] : memref<8x128xf32, #tpu.memory_space<vmem>>, vector<8x16xf32>
    %c0_2 = arith.constant 0 : index
    %c80 = arith.constant 80 : index
    %2 = vector.load %arg0[%c0_2, %c80] : memref<8x128xf32, #tpu.memory_space<vmem>>, vector<8x8xf32>
    %c0_3 = arith.constant 0 : index
    %c0_4 = arith.constant 0 : index
    %3 = vector.load %arg1[%c0_3, %c0_4] : memref<448x128xf32, #tpu.memory_space<vmem>>, vector<64x64xf32>
    %c440 = arith.constant 440 : index
    %c0_5 = arith.constant 0 : index
    %4 = vector.load %arg1[%c440, %c0_5] : memref<448x128xf32, #tpu.memory_space<vmem>>, vector<1x64xf32>
    %cst = arith.constant dense<0.000000e+00> : vector<8x64xf32>
    %5 = tpu.matmul %0, %3, %cst {dimension_numbers = #tpu.dot_dimension_numbers<[1], [0], [0], [1], [0, 0, 1, 1], [], []>} : vector<8x64xf32>, vector<64x64xf32>, vector<8x64xf32> -> vector<8x64xf32>
    %6 = vector.broadcast %4 : vector<1x64xf32> to vector<8x64xf32>
    %7 = arith.addf %5, %6 : vector<8x64xf32>
    %8 = math.tanh %7 : vector<8x64xf32>
    %c64_6 = arith.constant 64 : index
    %c0_7 = arith.constant 0 : index
    %9 = vector.load %arg1[%c64_6, %c0_7] : memref<448x128xf32, #tpu.memory_space<vmem>>, vector<64x48xf32>
    %c441 = arith.constant 441 : index
    %c0_8 = arith.constant 0 : index
    %10 = vector.load %arg1[%c441, %c0_8] : memref<448x128xf32, #tpu.memory_space<vmem>>, vector<1x48xf32>
    %cst_9 = arith.constant dense<0.000000e+00> : vector<8x48xf32>
    %11 = tpu.matmul %8, %9, %cst_9 {dimension_numbers = #tpu.dot_dimension_numbers<[1], [0], [0], [1], [0, 0, 1, 1], [], []>} : vector<8x64xf32>, vector<64x48xf32>, vector<8x48xf32> -> vector<8x48xf32>
    %12 = vector.broadcast %10 : vector<1x48xf32> to vector<8x48xf32>
    %13 = arith.addf %11, %12 : vector<8x48xf32>
    %14 = vector.extract_strided_slice %13 {offsets = [0, 0], sizes = [8, 16], strides = [1, 1]} : vector<8x48xf32> to vector<8x16xf32>
    %15 = vector.extract_strided_slice %13 {offsets = [0, 16], sizes = [8, 16], strides = [1, 1]} : vector<8x48xf32> to vector<8x16xf32>
    %16 = vector.extract_strided_slice %13 {offsets = [0, 32], sizes = [8, 8], strides = [1, 1]} : vector<8x48xf32> to vector<8x8xf32>
    %17 = vector.extract_strided_slice %13 {offsets = [0, 40], sizes = [8, 8], strides = [1, 1]} : vector<8x48xf32> to vector<8x8xf32>
    %18 = math.exp %15 : vector<8x16xf32>
    %19 = arith.mulf %18, %1 : vector<8x16xf32>
    %20 = arith.addf %14, %19 : vector<8x16xf32>
    %21 = math.exp %17 : vector<8x8xf32>
    %22 = arith.mulf %21, %2 : vector<8x8xf32>
    %23 = arith.addf %16, %22 : vector<8x8xf32>
    %c128 = arith.constant 128 : index
    %c0_10 = arith.constant 0 : index
    %24 = vector.load %arg1[%c128, %c0_10] : memref<448x128xf32, #tpu.memory_space<vmem>>, vector<8x128xf32>
    %c442 = arith.constant 442 : index
    %c0_11 = arith.constant 0 : index
    %25 = vector.load %arg1[%c442, %c0_11] : memref<448x128xf32, #tpu.memory_space<vmem>>, vector<1x128xf32>
    %cst_12 = arith.constant dense<0.000000e+00> : vector<8x128xf32>
    %26 = tpu.matmul %23, %24, %cst_12 {dimension_numbers = #tpu.dot_dimension_numbers<[1], [0], [0], [1], [0, 0, 1, 1], [], []>} : vector<8x8xf32>, vector<8x128xf32>, vector<8x128xf32> -> vector<8x128xf32>
    %27 = vector.broadcast %25 : vector<1x128xf32> to vector<8x128xf32>
    %28 = arith.addf %26, %27 : vector<8x128xf32>
    %29 = math.tanh %28 : vector<8x128xf32>
    %c136 = arith.constant 136 : index
    %c0_13 = arith.constant 0 : index
    %30 = vector.load %arg1[%c136, %c0_13] : memref<448x128xf32, #tpu.memory_space<vmem>>, vector<128x128xf32>
    %c443 = arith.constant 443 : index
    %c0_14 = arith.constant 0 : index
    %31 = vector.load %arg1[%c443, %c0_14] : memref<448x128xf32, #tpu.memory_space<vmem>>, vector<1x128xf32>
    %cst_15 = arith.constant dense<0.000000e+00> : vector<8x128xf32>
    %32 = tpu.matmul %29, %30, %cst_15 {dimension_numbers = #tpu.dot_dimension_numbers<[1], [0], [0], [1], [0, 0, 1, 1], [], []>} : vector<8x128xf32>, vector<128x128xf32>, vector<8x128xf32> -> vector<8x128xf32>
    %33 = vector.broadcast %31 : vector<1x128xf32> to vector<8x128xf32>
    %34 = arith.addf %32, %33 : vector<8x128xf32>
    %35 = vector.extract_strided_slice %34 {offsets = [0, 0], sizes = [8, 64], strides = [1, 1]} : vector<8x128xf32> to vector<8x64xf32>
    %36 = vector.extract_strided_slice %34 {offsets = [0, 64], sizes = [8, 64], strides = [1, 1]} : vector<8x128xf32> to vector<8x64xf32>
    %cst_16 = arith.constant -2.000000e+00 : f32
    %37 = vector.broadcast %cst_16 : f32 to vector<8x64xf32>
    %38 = arith.mulf %37, %36 : vector<8x64xf32>
    %39 = math.exp %38 : vector<8x64xf32>
    %c264 = arith.constant 264 : index
    %c0_17 = arith.constant 0 : index
    %40 = vector.load %arg1[%c264, %c0_17] : memref<448x128xf32, #tpu.memory_space<vmem>>, vector<16x32xf32>
    %c444 = arith.constant 444 : index
    %c0_18 = arith.constant 0 : index
    %41 = vector.load %arg1[%c444, %c0_18] : memref<448x128xf32, #tpu.memory_space<vmem>>, vector<1x32xf32>
    %c280 = arith.constant 280 : index
    %c0_19 = arith.constant 0 : index
    %42 = vector.load %arg1[%c280, %c0_19] : memref<448x128xf32, #tpu.memory_space<vmem>>, vector<32x64xf32>
    %c445 = arith.constant 445 : index
    %c0_20 = arith.constant 0 : index
    %43 = vector.load %arg1[%c445, %c0_20] : memref<448x128xf32, #tpu.memory_space<vmem>>, vector<1x64xf32>
    %cst_21 = arith.constant dense<0.000000e+00> : vector<8x32xf32>
    %44 = tpu.matmul %20, %40, %cst_21 {dimension_numbers = #tpu.dot_dimension_numbers<[1], [0], [0], [1], [0, 0, 1, 1], [], []>} : vector<8x16xf32>, vector<16x32xf32>, vector<8x32xf32> -> vector<8x32xf32>
    %45 = vector.broadcast %41 : vector<1x32xf32> to vector<8x32xf32>
    %46 = arith.addf %44, %45 : vector<8x32xf32>
    %47 = math.tanh %46 : vector<8x32xf32>
    %cst_22 = arith.constant dense<0.000000e+00> : vector<8x64xf32>
    %48 = tpu.matmul %47, %42, %cst_22 {dimension_numbers = #tpu.dot_dimension_numbers<[1], [0], [0], [1], [0, 0, 1, 1], [], []>} : vector<8x32xf32>, vector<32x64xf32>, vector<8x64xf32> -> vector<8x64xf32>
    %49 = vector.broadcast %43 : vector<1x64xf32> to vector<8x64xf32>
    %50 = arith.addf %48, %49 : vector<8x64xf32>
    %cst_23 = arith.constant 0.000000e+00 : f32
    %51 = vector.broadcast %cst_23 : f32 to vector<8x64xf32>
    %52 = arith.maximumf %50, %51 : vector<8x64xf32>
    %53 = arith.mulf %50, %0 : vector<8x64xf32>
    %54 = arith.subf %52, %53 : vector<8x64xf32>
    %55 = math.absf %50 : vector<8x64xf32>
    %cst_24 = arith.constant 0.000000e+00 : f32
    %56 = vector.broadcast %cst_24 : f32 to vector<8x64xf32>
    %57 = arith.subf %56, %55 : vector<8x64xf32>
    %58 = math.exp %57 : vector<8x64xf32>
    %59 = math.log1p %58 : vector<8x64xf32>
    %60 = arith.addf %54, %59 : vector<8x64xf32>
    %cst_25 = arith.constant dense<0.000000e+00> : vector<8xf32>
    %61 = vector.multi_reduction <add>, %60, %cst_25 [1] : vector<8x64xf32> to vector<8xf32>
    %62 = vector.shape_cast %61 : vector<8xf32> to vector<8x1xf32>
    %63 = tpu.concatenate %20, %20, %20, %20 in 1 : vector<8x16xf32>, vector<8x16xf32>, vector<8x16xf32>, vector<8x16xf32> -> vector<8x64xf32>
    %64 = tpu.concatenate %14, %14, %14, %14 in 1 : vector<8x16xf32>, vector<8x16xf32>, vector<8x16xf32>, vector<8x16xf32> -> vector<8x64xf32>
    %65 = tpu.concatenate %15, %15, %15, %15 in 1 : vector<8x16xf32>, vector<8x16xf32>, vector<8x16xf32>, vector<8x16xf32> -> vector<8x64xf32>
    %cst_26 = arith.constant 2.000000e+00 : f32
    %66 = vector.broadcast %cst_26 : f32 to vector<8x64xf32>
    %67 = arith.mulf %66, %65 : vector<8x64xf32>
    %68 = math.exp %67 : vector<8x64xf32>
    %69 = arith.subf %63, %35 : vector<8x64xf32>
    %70 = arith.mulf %69, %69 : vector<8x64xf32>
    %71 = arith.mulf %70, %39 : vector<8x64xf32>
    %cst_27 = arith.constant 2.000000e+00 : f32
    %72 = vector.broadcast %cst_27 : f32 to vector<8x64xf32>
    %73 = arith.mulf %72, %36 : vector<8x64xf32>
    %74 = arith.addf %71, %73 : vector<8x64xf32>
    %75 = arith.mulf %68, %39 : vector<8x64xf32>
    %cst_28 = arith.constant 1.000000e+00 : f32
    %76 = vector.broadcast %cst_28 : f32 to vector<8x64xf32>
    %77 = arith.subf %75, %76 : vector<8x64xf32>
    %cst_29 = arith.constant 2.000000e+00 : f32
    %78 = vector.broadcast %cst_29 : f32 to vector<8x64xf32>
    %79 = arith.mulf %78, %65 : vector<8x64xf32>
    %80 = arith.subf %77, %79 : vector<8x64xf32>
    %cst_30 = arith.constant 2.000000e+00 : f32
    %81 = vector.broadcast %cst_30 : f32 to vector<8x64xf32>
    %82 = arith.mulf %81, %36 : vector<8x64xf32>
    %83 = arith.addf %80, %82 : vector<8x64xf32>
    %84 = arith.subf %64, %35 : vector<8x64xf32>
    %85 = arith.mulf %84, %84 : vector<8x64xf32>
    %86 = arith.mulf %85, %39 : vector<8x64xf32>
    %87 = arith.addf %83, %86 : vector<8x64xf32>
    %c312 = arith.constant 312 : index
    %c0_31 = arith.constant 0 : index
    %88 = vector.load %arg1[%c312, %c0_31] : memref<448x128xf32, #tpu.memory_space<vmem>>, vector<128x8xf32>
    %89 = tpu.concatenate %74, %87 in 1 : vector<8x64xf32>, vector<8x64xf32> -> vector<8x128xf32>
    %cst_32 = arith.constant dense<0.000000e+00> : vector<8x8xf32>
    %90 = tpu.matmul %89, %88, %cst_32 {dimension_numbers = #tpu.dot_dimension_numbers<[1], [0], [0], [1], [0, 0, 1, 1], [], []>} : vector<8x128xf32>, vector<128x8xf32>, vector<8x8xf32> -> vector<8x8xf32>
    %91 = vector.extract_strided_slice %90 {offsets = [0, 0], sizes = [8, 4], strides = [1, 1]} : vector<8x8xf32> to vector<8x4xf32>
    %cst_33 = arith.constant -5.000000e-01 : f32
    %92 = vector.broadcast %cst_33 : f32 to vector<8x4xf32>
    %93 = arith.mulf %92, %91 : vector<8x4xf32>
    %94 = vector.extract_strided_slice %90 {offsets = [0, 4], sizes = [8, 4], strides = [1, 1]} : vector<8x8xf32> to vector<8x4xf32>
    %cst_34 = arith.constant 5.000000e-01 : f32
    %95 = vector.broadcast %cst_34 : f32 to vector<8x4xf32>
    %96 = arith.mulf %95, %94 : vector<8x4xf32>
    %cst_35 = arith.constant dense<0xFF800000> : vector<8xf32>
    %97 = vector.multi_reduction <maximumf>, %93, %cst_35 [1] : vector<8x4xf32> to vector<8xf32>
    %98 = vector.shape_cast %97 : vector<8xf32> to vector<8x1xf32>
    %99 = vector.broadcast %98 : vector<8x1xf32> to vector<8x4xf32>
    %100 = arith.subf %93, %99 : vector<8x4xf32>
    %101 = math.exp %100 : vector<8x4xf32>
    %cst_36 = arith.constant dense<0.000000e+00> : vector<8xf32>
    %102 = vector.multi_reduction <add>, %101, %cst_36 [1] : vector<8x4xf32> to vector<8xf32>
    %103 = vector.shape_cast %102 : vector<8xf32> to vector<8x1xf32>
    %104 = tpu.reciprocal %103 {approx = true} : vector<8x1xf32> -> vector<8x1xf32>
    %105 = vector.broadcast %104 : vector<8x1xf32> to vector<8x4xf32>
    %106 = arith.mulf %101, %105 : vector<8x4xf32>
    %cst_37 = arith.constant 1.000000e-10 : f32
    %107 = vector.broadcast %cst_37 : f32 to vector<8x4xf32>
    %108 = arith.addf %106, %107 : vector<8x4xf32>
    %109 = math.log %108 : vector<8x4xf32>
    %cst_38 = arith.constant 1.38629436 : f32
    %110 = vector.broadcast %cst_38 : f32 to vector<8x4xf32>
    %111 = arith.addf %109, %110 : vector<8x4xf32>
    %112 = arith.mulf %106, %111 : vector<8x4xf32>
    %cst_39 = arith.constant dense<0.000000e+00> : vector<8xf32>
    %113 = vector.multi_reduction <add>, %112, %cst_39 [1] : vector<8x4xf32> to vector<8xf32>
    %114 = vector.shape_cast %113 : vector<8xf32> to vector<8x1xf32>
    %cst_40 = arith.constant 0.000000e+00 : f32
    %115 = vector.broadcast %cst_40 : f32 to vector<8x8xf32>
    %116 = arith.subf %115, %17 : vector<8x8xf32>
    %cst_41 = arith.constant 2.000000e+00 : f32
    %117 = vector.broadcast %cst_41 : f32 to vector<8x8xf32>
    %118 = arith.mulf %117, %17 : vector<8x8xf32>
    %119 = math.exp %118 : vector<8x8xf32>
    %120 = arith.mulf %16, %16 : vector<8x8xf32>
    %121 = arith.addf %119, %120 : vector<8x8xf32>
    %cst_42 = arith.constant 1.000000e+00 : f32
    %122 = vector.broadcast %cst_42 : f32 to vector<8x8xf32>
    %123 = arith.subf %121, %122 : vector<8x8xf32>
    %cst_43 = arith.constant 5.000000e-01 : f32
    %124 = vector.broadcast %cst_43 : f32 to vector<8x8xf32>
    %125 = arith.mulf %123, %124 : vector<8x8xf32>
    %126 = arith.addf %116, %125 : vector<8x8xf32>
    %cst_44 = arith.constant dense<0.000000e+00> : vector<8xf32>
    %127 = vector.multi_reduction <add>, %126, %cst_44 [1] : vector<8x8xf32> to vector<8xf32>
    %128 = vector.shape_cast %127 : vector<8xf32> to vector<8x1xf32>
    %129 = arith.mulf %96, %106 : vector<8x4xf32>
    %cst_45 = arith.constant dense<0.000000e+00> : vector<8xf32>
    %130 = vector.multi_reduction <add>, %129, %cst_45 [1] : vector<8x4xf32> to vector<8xf32>
    %131 = vector.shape_cast %130 : vector<8xf32> to vector<8x1xf32>
    %132 = arith.addf %62, %114 : vector<8x1xf32>
    %133 = arith.addf %132, %131 : vector<8x1xf32>
    %134 = arith.addf %133, %128 : vector<8x1xf32>
    %135 = vector.shape_cast %134 : vector<8x1xf32> to vector<1x8x1xf32>
    %cst_46 = arith.constant dense<0.000000e+00> : vector<1xf32>
    %136 = vector.multi_reduction <add>, %135, %cst_46 [1, 2] : vector<1x8x1xf32> to vector<1xf32>
    %137 = vector.shape_cast %136 : vector<1xf32> to vector<1x1x1xf32>
    %138 = vector.extract %137[0, 0, 0] : f32 from vector<1x1x1xf32>
    %cst_47 = arith.constant 8.000000e+00 : f32
    %139 = arith.divf %138, %cst_47 : f32
    %140 = vector.broadcast %139 : f32 to vector<1x1xf32>
    %141 = vector.shape_cast %140 : vector<1x1xf32> to vector<1x1xf32>
    %142 = vector.broadcast %141 : vector<1x1xf32> to vector<1x128xf32>
    %c0_48 = arith.constant 0 : index
    %c0_49 = arith.constant 0 : index
    %143 = vector.load %arg2[%c0_48, %c0_49] : memref<1x128xf32, #tpu.memory_space<vmem>>, vector<1x128xf32>
    tpu.vector_store %arg2[%c0_48, %c0_49], %142 {strides = array<i32>} : memref<1x128xf32, #tpu.memory_space<vmem>>, vector<1x128xf32>,
    return
  }
}

</mosaic_0001>

<llo_original>
// kernel: gmvae_elbo.1
$region0: #{gmvae_elbo.1}
  #allocation0 [shape = 'u32[]', space=smem, size = 0x4, offset = 0x4, fixed_abs, tag = 'smem constant byte address 0x4 - core index']
  #allocation1 [shape = 'u32[144,128]{1,0:T(1,128)}', space=vmem, size = 0x12000, scoped, tag = 'internal scratch']
  %s0 = inlined_call_operand.vmem [shape: f32[8,128], index: 0, kind: input, shape index: {}]
  %s1 = inlined_call_operand.hbm [shape: f32[448,128], index: 1, kind: input, shape index: {}]
  %s2 = inlined_call_operand.hbm [shape: f32[1,128], index: 2, kind: output, shape index: {}]
  %s3 = sld [smem:[#allocation0]]
  $region22: #{gmvae_elbo.1} parent=0
    _
  %s5 = ssub.s32 1, %s3
  %s6 = scalar_select 0, %s5, %s3
  $region1: #{gmvae_elbo.1} parent=0
    #allocation2 [shape = 'u8[229376]{0}', space=vmem, size = 0x38000, scoped, tag = 'input window, operand 1, single buffered']
    #allocation3 [shape = 's32[1]{0}', space=sflag, size = 0x4, scoped, tag = 'scoped memory for gmvae_elbo.1']
    #allocation4 [shape = 's32[1]{0}', space=sflag, size = 0x4, scoped, tag = 'scoped memory for gmvae_elbo.1']
    #allocation5 [shape = 'u8[512]{0}', space=vmem, size = 0x400, scoped, tag = 'output window, operand 0, single buffered']
    %7 = vsyncpa [#allocation3], 0
    %8 = vsyncpa [#allocation4], 0
    // Predicated region
    $region2: #{gmvae_elbo.1} parent=1 // pred_check
      _
    $region3: #{gmvae_elbo.1} parent=1 // pred_check_branch
      %10 = sbr.rel (0) target = $region5
    $region4: #{gmvae_elbo.1} parent=1 // pred_region
      _
    $region5: #{gmvae_elbo.1} parent=1 // pred_fallthru
      _
    // Predicated region
    $region6: #{gmvae_elbo.1} parent=1 // pred_check
      _
    $region7: #{gmvae_elbo.1} parent=1 // pred_check_branch
      %12 = sbr.rel (0) target = $region9
    $region8: #{gmvae_elbo.1} parent=1 // pred_region
      %s14 = ssub.s32 7168, 7168
      %15 = vsyncadd [#allocation3], %s14
      %s16 = sshll.u32 [#allocation2], 4
      %s17 = int_to_ptr.vmem [resolvable:$true] %s16
      %22 = dma.hbm_to_vmem [thread:$0]  %s1, 7168, %s17, [#allocation3], 128, 128, 8
    $region9: #{gmvae_elbo.1} parent=1 // pred_fallthru
      _
    // Predicated region
    $region10: #{gmvae_elbo.1} parent=1 // pred_check
      _
    $region11: #{gmvae_elbo.1} parent=1 // pred_check_branch
      %24 = sbr.rel (0) target = $region13
    $region12: #{gmvae_elbo.1} parent=1 // pred_region
      %25 = dma.done [#allocation3], 7168
    $region13: #{gmvae_elbo.1} parent=1 // pred_fallthru
      _
    %v26 = vld [vmem:[%s0] sm:$0xff]
    %v27 = vld [vmem:[#allocation2] sm:$0xff]
    %v28 = vld [vmem:[#allocation2 + $0x8] sm:$0xff]
    %v29 = vld [vmem:[#allocation2 + $0x10] sm:$0xff]
    %v30 = vld [vmem:[#allocation2 + $0x18] sm:$0xff]
    %v31 = vld [vmem:[#allocation2 + $0x20] sm:$0xff]
    %v32 = vld [vmem:[#allocation2 + $0x28] sm:$0xff]
    %v33 = vld [vmem:[#allocation2 + $0x30] sm:$0xff]
    %v34 = vld [vmem:[#allocation2 + $0x38] sm:$0xff]
    %v35 = vld [vmem:[#allocation2 + $0x1b8] sm:$0x1]
    %v36 = vlaneseq
    %v37 = vshrl.u32 %v36, 7
    %v38 = vsub.s32 0, %v37
    %v39 = vrot.slane %v35, %v38
    %vm40 = vcmask 523264
    %v42 = vsel %vm40, %v26, 0
    %44 = vmatprep.subr.mxu0 0.0
    %45 = vmatpush1.msra.mxu0 0.0
    %46 = vmatprep.subr.mxu0 0.0
    %47 = vmatpush1.msra.mxu0 0.0
    %48 = vmatprep.subr.mxu0 0.0
    %49 = vmatpush1.msra.mxu0 0.0
    %50 = vmatprep.subr.mxu0 0.0
    %51 = vmatpush1.msra.mxu0 0.0
    %52 = vmatprep.subr.mxu0 0.0
    %53 = vmatpush1.msra.mxu0 0.0
    %54 = vmatprep.subr.mxu0 0.0
    %55 = vmatpush1.msra.mxu0 0.0
    %56 = vmatprep.subr.mxu0 0.0
    %57 = vmatpush1.msra.mxu0 0.0
    %58 = vmatprep.subr.mxu0 0.0
    %59 = vmatpush1.msra.mxu0 0.0
    %60 = vmatprep.subr.mxu0 0.0
    %61 = vmatpush1.msra.mxu0 %v34
    %62 = vmatprep.subr.mxu0 0.0
    %63 = vmatpush1.msra.mxu0 %v33
    %64 = vmatprep.subr.mxu0 0.0
    %65 = vmatpush1.msra.mxu0 %v32
    %66 = vmatprep.subr.mxu0 0.0
    %67 = vmatpush1.msra.mxu0 %v31
    %68 = vmatprep.subr.mxu0 0.0
    %69 = vmatpush1.msra.mxu0 %v30
    %70 = vmatprep.subr.mxu0 0.0
    %71 = vmatpush1.msra.mxu0 %v29
    %72 = vmatprep.subr.mxu0 0.0
    %73 = vmatpush1.msra.mxu0 %v28
    %74 = vmatprep.subr.mxu0 0.0
    %75 = vmatpush1.msra.mxu0 %v27
    %76 = vmatprep.subr.mxu0 0.0
    %77 = vmatpush2.msra.mxu0 0.0
    %78 = vmatprep.subr.mxu0 0.0
    %79 = vmatpush2.msra.mxu0 0.0
    %80 = vmatprep.subr.mxu0 0.0
    %81 = vmatpush2.msra.mxu0 0.0
    %82 = vmatprep.subr.mxu0 0.0
    %83 = vmatpush2.msra.mxu0 0.0
    %84 = vmatprep.subr.mxu0 0.0
    %85 = vmatpush2.msra.mxu0 0.0
    %86 = vmatprep.subr.mxu0 0.0
    %87 = vmatpush2.msra.mxu0 0.0
    %88 = vmatprep.subr.mxu0 0.0
    %89 = vmatpush2.msra.mxu0 0.0
    %90 = vmatprep.subr.mxu0 0.0
    %91 = vmatpush2.msra.mxu0 0.0
    %92 = vmatprep.subr.mxu0 0.0
    %93 = vmatpush2.msra.mxu0 0.0
    %94 = vmatprep.subr.mxu0 0.0
    %95 = vmatpush2.msra.mxu0 0.0
    %96 = vmatprep.subr.mxu0 0.0
    %97 = vmatpush2.msra.mxu0 0.0
    %98 = vmatprep.subr.mxu0 0.0
    %99 = vmatpush2.msra.mxu0 0.0
    %100 = vmatprep.subr.mxu0 0.0
    %101 = vmatpush2.msra.mxu0 0.0
    %102 = vmatprep.subr.mxu0 0.0
    %103 = vmatpush2.msra.mxu0 0.0
    %104 = vmatprep.subr.mxu0 0.0
    %105 = vmatpush2.msra.mxu0 0.0
    %106 = vmatprep.subr.mxu0 0.0
    %107 = vmatpush2.msra.mxu0 0.0
    %108 = vmatprep.mubr.f32.mxu0 0.0
    %109 = vmatmul.mubr.f32.gmra.mxu0 %v42
    %v110 = vpop.f32.mrf.mxu0
    %v111 = vadd.f32 %v39, %v110
    %v112 = vpop.f32.mrf.mxu0
    %113 = vdwg.mxu0
    %v114 = vtanh.pop %v111
    %v115 = vld [vmem:[#allocation2 + $0x40] sm:$0xff]
    %v116 = vld [vmem:[#allocation2 + $0x48] sm:$0xff]
    %v117 = vld [vmem:[#allocation2 + $0x50] sm:$0xff]
    %v118 = vld [vmem:[#allocation2 + $0x58] sm:$0xff]
    %v119 = vld [vmem:[#allocation2 + $0x60] sm:$0xff]
    %v120 = vld [vmem:[#allocation2 + $0x68] sm:$0xff]
    %v121 = vld [vmem:[#allocation2 + $0x70] sm:$0xff]
    %v122 = vld [vmem:[#allocation2 + $0x78] sm:$0xff]
    %v123 = vld [vmem:[#allocation2 + $0x1b9] sm:$0x1]
    %v124 = vlaneseq
    %v125 = vshrl.u32 %v124, 7
    %v126 = vsub.s32 0, %v125
    %v127 = vrot.slane %v123, %v126
    %v129 = vsel %vm40, %v114, 0
    %131 = vmatprep.subr.mxu0 0.0
    %132 = vmatpush1.msra.mxu0 0.0
    %133 = vmatprep.subr.mxu0 0.0
    %134 = vmatpush1.msra.mxu0 0.0
    %135 = vmatprep.subr.mxu0 0.0
    %136 = vmatpush1.msra.mxu0 0.0
    %137 = vmatprep.subr.mxu0 0.0
    %138 = vmatpush1.msra.mxu0 0.0
    %139 = vmatprep.subr.mxu0 0.0
    %140 = vmatpush1.msra.mxu0 0.0
    %141 = vmatprep.subr.mxu0 0.0
    %142 = vmatpush1.msra.mxu0 0.0
    %143 = vmatprep.subr.mxu0 0.0
    %144 = vmatpush1.msra.mxu0 0.0
    %145 = vmatprep.subr.mxu0 0.0
    %146 = vmatpush1.msra.mxu0 0.0
    %147 = vmatprep.subr.mxu0 0.0
    %148 = vmatpush1.msra.mxu0 %v122
    %149 = vmatprep.subr.mxu0 0.0
    %150 = vmatpush1.msra.mxu0 %v121
    %151 = vmatprep.subr.mxu0 0.0
    %152 = vmatpush1.msra.mxu0 %v120
    %153 = vmatprep.subr.mxu0 0.0
    %154 = vmatpush1.msra.mxu0 %v119
    %155 = vmatprep.subr.mxu0 0.0
    %156 = vmatpush1.msra.mxu0 %v118
    %157 = vmatprep.subr.mxu0 0.0
    %158 = vmatpush1.msra.mxu0 %v117
    %159 = vmatprep.subr.mxu0 0.0
    %160 = vmatpush1.msra.mxu0 %v116
    %161 = vmatprep.subr.mxu0 0.0
    %162 = vmatpush1.msra.mxu0 %v115
    %163 = vmatprep.subr.mxu0 0.0
    %164 = vmatpush2.msra.mxu0 0.0
    %165 = vmatprep.subr.mxu0 0.0
    %166 = vmatpush2.msra.mxu0 0.0
    %167 = vmatprep.subr.mxu0 0.0
    %168 = vmatpush2.msra.mxu0 0.0
    %169 = vmatprep.subr.mxu0 0.0
    %170 = vmatpush2.msra.mxu0 0.0
    %171 = vmatprep.subr.mxu0 0.0
    %172 = vmatpush2.msra.mxu0 0.0
    %173 = vmatprep.subr.mxu0 0.0
    %174 = vmatpush2.msra.mxu0 0.0
    %175 = vmatprep.subr.mxu0 0.0
    %176 = vmatpush2.msra.mxu0 0.0
    %177 = vmatprep.subr.mxu0 0.0
    %178 = vmatpush2.msra.mxu0 0.0
    %179 = vmatprep.subr.mxu0 0.0
    %180 = vmatpush2.msra.mxu0 0.0
    %181 = vmatprep.subr.mxu0 0.0
    %182 = vmatpush2.msra.mxu0 0.0
    %183 = vmatprep.subr.mxu0 0.0
    %184 = vmatpush2.msra.mxu0 0.0
    %185 = vmatprep.subr.mxu0 0.0
    %186 = vmatpush2.msra.mxu0 0.0
    %187 = vmatprep.subr.mxu0 0.0
    %188 = vmatpush2.msra.mxu0 0.0
    %189 = vmatprep.subr.mxu0 0.0
    %190 = vmatpush2.msra.mxu0 0.0
    %191 = vmatprep.subr.mxu0 0.0
    %192 = vmatpush2.msra.mxu0 0.0
    %193 = vmatprep.subr.mxu0 0.0
    %194 = vmatpush2.msra.mxu0 0.0
    %195 = vmatprep.mubr.f32.mxu0 0.0
    %196 = vmatmul.mubr.f32.gmra.mxu0 %v129
    %v197 = vpop.f32.mrf.mxu0
    %v198 = vadd.f32 %v127, %v197
    %v199 = vpop.f32.mrf.mxu0
    %200 = vdwg.mxu0
    %v201 = vmul.f32 %v198, 1.442695
    %v202 = vpow.pop %v201
    %203 = vrot.lane.b32.xlu0 %v26, 80
    %v204 = vpop.permute.xlu0 %203
    %v206 = vmul.f32 %v202, %v204
    %208 = vrot.lane.b32.xlu0 %v206, 112
    %v209 = vpop.permute.xlu0 %208
    %v211 = vadd.f32 %v198, %v209
    %212 = vrot.lane.b32.xlu0 %v26, 88
    %v213 = vpop.permute.xlu0 %212
    %v215 = vmul.f32 %v202, %v213
    %217 = vrot.lane.b32.xlu0 %v215, 120
    %v218 = vpop.permute.xlu0 %217
    %v220 = vadd.f32 %v198, %v218
    %v221 = vld [vmem:[#allocation2 + $0x80] sm:$0xff]
    %v222 = vld [vmem:[#allocation2 + $0x1ba] sm:$0x1]
    %v223 = vlaneseq
    %v224 = vshrl.u32 %v223, 7
    %v225 = vsub.s32 0, %v224
    %v226 = vrot.slane %v222, %v225
    %228 = vrot.lane.b32.xlu0 %v220, 96
    %v229 = vpop.permute.xlu0 %228
    %vm230 = vcmask 64512
    %v231 = vsel %vm230, %v229, 0
    %233 = vmatprep.subr.mxu0 0.0
    %234 = vmatpush1.msra.mxu0 0.0
    %235 = vmatprep.subr.mxu0 0.0
    %236 = vmatpush1.msra.mxu0 0.0
    %237 = vmatprep.subr.mxu0 0.0
    %238 = vmatpush1.msra.mxu0 0.0
    %239 = vmatprep.subr.mxu0 0.0
    %240 = vmatpush1.msra.mxu0 0.0
    %241 = vmatprep.subr.mxu0 0.0
    %242 = vmatpush1.msra.mxu0 0.0
    %243 = vmatprep.subr.mxu0 0.0
    %244 = vmatpush1.msra.mxu0 0.0
    %245 = vmatprep.subr.mxu0 0.0
    %246 = vmatpush1.msra.mxu0 0.0
    %247 = vmatprep.subr.mxu0 0.0
    %248 = vmatpush1.msra.mxu0 0.0
    %249 = vmatprep.subr.mxu0 0.0
    %250 = vmatpush1.msra.mxu0 0.0
    %251 = vmatprep.subr.mxu0 0.0
    %252 = vmatpush1.msra.mxu0 0.0
    %253 = vmatprep.subr.mxu0 0.0
    %254 = vmatpush1.msra.mxu0 0.0
    %255 = vmatprep.subr.mxu0 0.0
    %256 = vmatpush1.msra.mxu0 0.0
    %257 = vmatprep.subr.mxu0 0.0
    %258 = vmatpush1.msra.mxu0 0.0
    %259 = vmatprep.subr.mxu0 0.0
    %260 = vmatpush1.msra.mxu0 0.0
    %261 = vmatprep.subr.mxu0 0.0
    %262 = vmatpush1.msra.mxu0 0.0
    %263 = vmatprep.subr.mxu0 0.0
    %264 = vmatpush1.msra.mxu0 %v221
    %265 = vmatprep.subr.mxu0 0.0
    %266 = vmatpush2.msra.mxu0 0.0
    %267 = vmatprep.subr.mxu0 0.0
    %268 = vmatpush2.msra.mxu0 0.0
    %269 = vmatprep.subr.mxu0 0.0
    %270 = vmatpush2.msra.mxu0 0.0
    %271 = vmatprep.subr.mxu0 0.0
    %272 = vmatpush2.msra.mxu0 0.0
    %273 = vmatprep.subr.mxu0 0.0
    %274 = vmatpush2.msra.mxu0 0.0
    %275 = vmatprep.subr.mxu0 0.0
    %276 = vmatpush2.msra.mxu0 0.0
    %277 = vmatprep.subr.mxu0 0.0
    %278 = vmatpush2.msra.mxu0 0.0
    %279 = vmatprep.subr.mxu0 0.0
    %280 = vmatpush2.msra.mxu0 0.0
    %281 = vmatprep.subr.mxu0 0.0
    %282 = vmatpush2.msra.mxu0 0.0
    %283 = vmatprep.subr.mxu0 0.0
    %284 = vmatpush2.msra.mxu0 0.0
    %285 = vmatprep.subr.mxu0 0.0
    %286 = vmatpush2.msra.mxu0 0.0
    %287 = vmatprep.subr.mxu0 0.0
    %288 = vmatpush2.msra.mxu0 0.0
    %289 = vmatprep.subr.mxu0 0.0
    %290 = vmatpush2.msra.mxu0 0.0
    %291 = vmatprep.subr.mxu0 0.0
    %292 = vmatpush2.msra.mxu0 0.0
    %293 = vmatprep.subr.mxu0 0.0
    %294 = vmatpush2.msra.mxu0 0.0
    %295 = vmatprep.subr.mxu0 0.0
    %296 = vmatpush2.msra.mxu0 0.0
    %297 = vmatprep.mubr.f32.mxu0 0.0
    %298 = vmatmul.mubr.f32.gmra.mxu0 %v231
    %v299 = vpop.f32.mrf.mxu0
    %v300 = vadd.f32 %v226, %v299
    %v301 = vpop.f32.mrf.mxu0
    %302 = vdwg.mxu0
    %v303 = vtanh.pop %v300
    %v304 = vld [vmem:[#allocation2 + $0x88] sm:$0xff]
    %v305 = vld [vmem:[#allocation2 + $0x90] sm:$0xff]
    %v306 = vld [vmem:[#allocation2 + $0x98] sm:$0xff]
    %v307 = vld [vmem:[#allocation2 + $0xa0] sm:$0xff]
    %v308 = vld [vmem:[#allocation2 + $0xa8] sm:$0xff]
    %v309 = vld [vmem:[#allocation2 + $0xb0] sm:$0xff]
    %v310 = vld [vmem:[#allocation2 + $0xb8] sm:$0xff]
    %v311 = vld [vmem:[#allocation2 + $0xc0] sm:$0xff]
    %v312 = vld [vmem:[#allocation2 + $0xc8] sm:$0xff]
    %v313 = vld [vmem:[#allocation2 + $0xd0] sm:$0xff]
    %v314 = vld [vmem:[#allocation2 + $0xd8] sm:$0xff]
    %v315 = vld [vmem:[#allocation2 + $0xe0] sm:$0xff]
    %v316 = vld [vmem:[#allocation2 + $0xe8] sm:$0xff]
    %v317 = vld [vmem:[#allocation2 + $0xf0] sm:$0xff]
    %v318 = vld [vmem:[#allocation2 + $0xf8] sm:$0xff]
    %v319 = vld [vmem:[#allocation2 + $0x100] sm:$0xff]
    %v320 = vld [vmem:[#allocation2 + $0x1bb] sm:$0x1]
    %v321 = vlaneseq
    %v322 = vshrl.u32 %v321, 7
    %v323 = vsub.s32 0, %v322
    %v324 = vrot.slane %v320, %v323
    %325 = vmatprep.subr.mxu0 0.0
    %326 = vmatpush1.msra.mxu0 %v319
    %327 = vmatprep.subr.mxu0 0.0
    %328 = vmatpush1.msra.mxu0 %v318
    %329 = vmatprep.subr.mxu0 0.0
    %330 = vmatpush1.msra.mxu0 %v317
    %331 = vmatprep.subr.mxu0 0.0
    %332 = vmatpush1.msra.mxu0 %v316
    %333 = vmatprep.subr.mxu0 0.0
    %334 = vmatpush1.msra.mxu0 %v315
    %335 = vmatprep.subr.mxu0 0.0
    %336 = vmatpush1.msra.mxu0 %v314
    %337 = vmatprep.subr.mxu0 0.0
    %338 = vmatpush1.msra.mxu0 %v313
    %339 = vmatprep.subr.mxu0 0.0
    %340 = vmatpush1.msra.mxu0 %v312
    %341 = vmatprep.subr.mxu0 0.0
    %342 = vmatpush1.msra.mxu0 %v311
    %343 = vmatprep.subr.mxu0 0.0
    %344 = vmatpush1.msra.mxu0 %v310
    %345 = vmatprep.subr.mxu0 0.0
    %346 = vmatpush1.msra.mxu0 %v309
    %347 = vmatprep.subr.mxu0 0.0
    %348 = vmatpush1.msra.mxu0 %v308
    %349 = vmatprep.subr.mxu0 0.0
    %350 = vmatpush1.msra.mxu0 %v307
    %351 = vmatprep.subr.mxu0 0.0
    %352 = vmatpush1.msra.mxu0 %v306
    %353 = vmatprep.subr.mxu0 0.0
    %354 = vmatpush1.msra.mxu0 %v305
    %355 = vmatprep.subr.mxu0 0.0
    %356 = vmatpush1.msra.mxu0 %v304
    %357 = vmatprep.subr.mxu0 0.0
    %358 = vmatpush2.msra.mxu0 0.0
    %359 = vmatprep.subr.mxu0 0.0
    %360 = vmatpush2.msra.mxu0 0.0
    %361 = vmatprep.subr.mxu0 0.0
    %362 = vmatpush2.msra.mxu0 0.0
    %363 = vmatprep.subr.mxu0 0.0
    %364 = vmatpush2.msra.mxu0 0.0
    %365 = vmatprep.subr.mxu0 0.0
    %366 = vmatpush2.msra.mxu0 0.0
    %367 = vmatprep.subr.mxu0 0.0
    %368 = vmatpush2.msra.mxu0 0.0
    %369 = vmatprep.subr.mxu0 0.0
    %370 = vmatpush2.msra.mxu0 0.0
    %371 = vmatprep.subr.mxu0 0.0
    %372 = vmatpush2.msra.mxu0 0.0
    %373 = vmatprep.subr.mxu0 0.0
    %374 = vmatpush2.msra.mxu0 0.0
    %375 = vmatprep.subr.mxu0 0.0
    %376 = vmatpush2.msra.mxu0 0.0
    %377 = vmatprep.subr.mxu0 0.0
    %378 = vmatpush2.msra.mxu0 0.0
    %379 = vmatprep.subr.mxu0 0.0
    %380 = vmatpush2.msra.mxu0 0.0
    %381 = vmatprep.subr.mxu0 0.0
    %382 = vmatpush2.msra.mxu0 0.0
    %383 = vmatprep.subr.mxu0 0.0
    %384 = vmatpush2.msra.mxu0 0.0
    %385 = vmatprep.subr.mxu0 0.0
    %386 = vmatpush2.msra.mxu0 0.0
    %387 = vmatprep.subr.mxu0 0.0
    %388 = vmatpush2.msra.mxu0 0.0
    %389 = vmatprep.mubr.f32.mxu0 0.0
    %390 = vmatmul.mubr.f32.gmra.mxu0 %v303
    %v391 = vpop.f32.mrf.mxu0
    %v392 = vadd.f32 %v324, %v391
    %v393 = vpop.f32.mrf.mxu0
    %394 = vdwg.mxu0
    %v395 = vmul.f32 %v392, -2.0
    %v396 = vmul.f32 %v395, 1.442695
    %v397 = vpow.pop %v396
    %v398 = vld [vmem:[#allocation2 + $0x108] sm:$0xff]
    %v399 = vld [vmem:[#allocation2 + $0x110] sm:$0xff]
    %v400 = vld [vmem:[#allocation2 + $0x1bc] sm:$0x1]
    %v401 = vld [vmem:[#allocation2 + $0x118] sm:$0xff]
    %v402 = vld [vmem:[#allocation2 + $0x120] sm:$0xff]
    %v403 = vld [vmem:[#allocation2 + $0x128] sm:$0xff]
    %v404 = vld [vmem:[#allocation2 + $0x130] sm:$0xff]
    %v405 = vld [vmem:[#allocation2 + $0x1bd] sm:$0x1]
    %v406 = vlaneseq
    %v407 = vshrl.u32 %v406, 7
    %v408 = vsub.s32 0, %v407
    %v409 = vrot.slane %v400, %v408
    %vm410 = vcmask 130048
    %v412 = vsel %vm410, %v211, 0
    %414 = vmatprep.subr.mxu0 0.0
    %415 = vmatpush1.msra.mxu0 0.0
    %416 = vmatprep.subr.mxu0 0.0
    %417 = vmatpush1.msra.mxu0 0.0
    %418 = vmatprep.subr.mxu0 0.0
    %419 = vmatpush1.msra.mxu0 0.0
    %420 = vmatprep.subr.mxu0 0.0
    %421 = vmatpush1.msra.mxu0 0.0
    %422 = vmatprep.subr.mxu0 0.0
    %423 = vmatpush1.msra.mxu0 0.0
    %424 = vmatprep.subr.mxu0 0.0
    %425 = vmatpush1.msra.mxu0 0.0
    %426 = vmatprep.subr.mxu0 0.0
    %427 = vmatpush1.msra.mxu0 0.0
    %428 = vmatprep.subr.mxu0 0.0
    %429 = vmatpush1.msra.mxu0 0.0
    %430 = vmatprep.subr.mxu0 0.0
    %431 = vmatpush1.msra.mxu0 0.0
    %432 = vmatprep.subr.mxu0 0.0
    %433 = vmatpush1.msra.mxu0 0.0
    %434 = vmatprep.subr.mxu0 0.0
    %435 = vmatpush1.msra.mxu0 0.0
    %436 = vmatprep.subr.mxu0 0.0
    %437 = vmatpush1.msra.mxu0 0.0
    %438 = vmatprep.subr.mxu0 0.0
    %439 = vmatpush1.msra.mxu0 0.0
    %440 = vmatprep.subr.mxu0 0.0
    %441 = vmatpush1.msra.mxu0 0.0
    %442 = vmatprep.subr.mxu0 0.0
    %443 = vmatpush1.msra.mxu0 %v399
    %444 = vmatprep.subr.mxu0 0.0
    %445 = vmatpush1.msra.mxu0 %v398
    %446 = vmatprep.subr.mxu0 0.0
    %447 = vmatpush2.msra.mxu0 0.0
    %448 = vmatprep.subr.mxu0 0.0
    %449 = vmatpush2.msra.mxu0 0.0
    %450 = vmatprep.subr.mxu0 0.0
    %451 = vmatpush2.msra.mxu0 0.0
    %452 = vmatprep.subr.mxu0 0.0
    %453 = vmatpush2.msra.mxu0 0.0
    %454 = vmatprep.subr.mxu0 0.0
    %455 = vmatpush2.msra.mxu0 0.0
    %456 = vmatprep.subr.mxu0 0.0
    %457 = vmatpush2.msra.mxu0 0.0
    %458 = vmatprep.subr.mxu0 0.0
    %459 = vmatpush2.msra.mxu0 0.0
    %460 = vmatprep.subr.mxu0 0.0
    %461 = vmatpush2.msra.mxu0 0.0
    %462 = vmatprep.subr.mxu0 0.0
    %463 = vmatpush2.msra.mxu0 0.0
    %464 = vmatprep.subr.mxu0 0.0
    %465 = vmatpush2.msra.mxu0 0.0
    %466 = vmatprep.subr.mxu0 0.0
    %467 = vmatpush2.msra.mxu0 0.0
    %468 = vmatprep.subr.mxu0 0.0
    %469 = vmatpush2.msra.mxu0 0.0
    %470 = vmatprep.subr.mxu0 0.0
    %471 = vmatpush2.msra.mxu0 0.0
    %472 = vmatprep.subr.mxu0 0.0
    %473 = vmatpush2.msra.mxu0 0.0
    %474 = vmatprep.subr.mxu0 0.0
    %475 = vmatpush2.msra.mxu0 0.0
    %476 = vmatprep.subr.mxu0 0.0
    %477 = vmatpush2.msra.mxu0 0.0
    %478 = vmatprep.mubr.f32.mxu0 0.0
    %479 = vmatmul.mubr.f32.gmra.mxu0 %v412
    %v480 = vpop.f32.mrf.mxu0
    %v481 = vadd.f32 %v409, %v480
    %v482 = vpop.f32.mrf.mxu0
    %483 = vdwg.mxu0
    %v484 = vtanh.pop %v481
    %v485 = vlaneseq
    %v486 = vshrl.u32 %v485, 7
    %v487 = vsub.s32 0, %v486
    %v488 = vrot.slane %v405, %v487
    %vm489 = vcmask 261120
    %v491 = vsel %vm489, %v484, 0
    %493 = vmatprep.subr.mxu0 0.0
    %494 = vmatpush1.msra.mxu0 0.0
    %495 = vmatprep.subr.mxu0 0.0
    %496 = vmatpush1.msra.mxu0 0.0
    %497 = vmatprep.subr.mxu0 0.0
    %498 = vmatpush1.msra.mxu0 0.0
    %499 = vmatprep.subr.mxu0 0.0
    %500 = vmatpush1.msra.mxu0 0.0
    %501 = vmatprep.subr.mxu0 0.0
    %502 = vmatpush1.msra.mxu0 0.0
    %503 = vmatprep.subr.mxu0 0.0
    %504 = vmatpush1.msra.mxu0 0.0
    %505 = vmatprep.subr.mxu0 0.0
    %506 = vmatpush1.msra.mxu0 0.0
    %507 = vmatprep.subr.mxu0 0.0
    %508 = vmatpush1.msra.mxu0 0.0
    %509 = vmatprep.subr.mxu0 0.0
    %510 = vmatpush1.msra.mxu0 0.0
    %511 = vmatprep.subr.mxu0 0.0
    %512 = vmatpush1.msra.mxu0 0.0
    %513 = vmatprep.subr.mxu0 0.0
    %514 = vmatpush1.msra.mxu0 0.0
    %515 = vmatprep.subr.mxu0 0.0
    %516 = vmatpush1.msra.mxu0 0.0
    %517 = vmatprep.subr.mxu0 0.0
    %518 = vmatpush1.msra.mxu0 %v404
    %519 = vmatprep.subr.mxu0 0.0
    %520 = vmatpush1.msra.mxu0 %v403
    %521 = vmatprep.subr.mxu0 0.0
    %522 = vmatpush1.msra.mxu0 %v402
    %523 = vmatprep.subr.mxu0 0.0
    %524 = vmatpush1.msra.mxu0 %v401
    %525 = vmatprep.subr.mxu0 0.0
    %526 = vmatpush2.msra.mxu0 0.0
    %527 = vmatprep.subr.mxu0 0.0
    %528 = vmatpush2.msra.mxu0 0.0
    %529 = vmatprep.subr.mxu0 0.0
    %530 = vmatpush2.msra.mxu0 0.0
    %531 = vmatprep.subr.mxu0 0.0
    %532 = vmatpush2.msra.mxu0 0.0
    %533 = vmatprep.subr.mxu0 0.0
    %534 = vmatpush2.msra.mxu0 0.0
    %535 = vmatprep.subr.mxu0 0.0
    %536 = vmatpush2.msra.mxu0 0.0
    %537 = vmatprep.subr.mxu0 0.0
    %538 = vmatpush2.msra.mxu0 0.0
    %539 = vmatprep.subr.mxu0 0.0
    %540 = vmatpush2.msra.mxu0 0.0
    %541 = vmatprep.subr.mxu0 0.0
    %542 = vmatpush2.msra.mxu0 0.0
    %543 = vmatprep.subr.mxu0 0.0
    %544 = vmatpush2.msra.mxu0 0.0
    %545 = vmatprep.subr.mxu0 0.0
    %546 = vmatpush2.msra.mxu0 0.0
    %547 = vmatprep.subr.mxu0 0.0
    %548 = vmatpush2.msra.mxu0 0.0
    %549 = vmatprep.subr.mxu0 0.0
    %550 = vmatpush2.msra.mxu0 0.0
    %551 = vmatprep.subr.mxu0 0.0
    %552 = vmatpush2.msra.mxu0 0.0
    %553 = vmatprep.subr.mxu0 0.0
    %554 = vmatpush2.msra.mxu0 0.0
    %555 = vmatprep.subr.mxu0 0.0
    %556 = vmatpush2.msra.mxu0 0.0
    %557 = vmatprep.mubr.f32.mxu0 0.0
    %558 = vmatmul.mubr.f32.gmra.mxu0 %v491
    %v559 = vpop.f32.mrf.mxu0
    %v560 = vadd.f32 %v488, %v559
    %v561 = vpop.f32.mrf.mxu0
    %562 = vdwg.mxu0
    %v563 = vmax.f32 %v560, 0.0
    %v564 = vmul.f32 %v560, %v26
    %v565 = vsub.f32 %v563, %v564
    %v566 = vand.u32 2147483647, %v560
    %v567 = vsub.f32 0.0, %v566
    %v568 = vmul.f32 %v567, 1.442695
    %v569 = vpow.pop %v568
    %v570 = vadd.f32 %v569, 1.0
    %v571 = vlog2.pop %v570
    %v572 = vmul.f32 %v571, 0.6931472
    %v573 = vmul.f32 -0.5, %v569
    %v574 = vadd.f32 %v573, 1.0
    %v575 = vmul.f32 %v574, %v569
    %v576 = vand.u32 2147483647, %v569
    %vm577 = vcmp.lt.f32.partialorder %v576, 0.0004427343
    %v578 = vsel %vm577, %v575, %v572
    %v579 = vadd.f32 %v565, %v578
    %v580 = vsel %vm40, %v579, 0.0
    %581 = vadd.xlane.f32.xlu0 %v580
    %v582 = vpop.xlane.xlu0 %581
    %583 = vrot.lane.b32.xlu0 %v211, 16
    %v584 = vpop.permute.xlu0 %583
    %586 = vrot.lane.b32.xlu0 %v211, 32
    %v587 = vpop.permute.xlu0 %586
    %589 = vrot.lane.b32.xlu0 %v211, 48
    %v590 = vpop.permute.xlu0 %589
    %v592 = vsel %vm410, %v211, %v584
    %v593 = vsel %vm489, %v592, %v587
    %vm594 = vcmask 392192
    %v595 = vsel %vm594, %v593, %v590
    %597 = vrot.lane.b32.xlu0 %v198, 16
    %v598 = vpop.permute.xlu0 %597
    %600 = vrot.lane.b32.xlu0 %v198, 32
    %v601 = vpop.permute.xlu0 %600
    %603 = vrot.lane.b32.xlu0 %v198, 48
    %v604 = vpop.permute.xlu0 %603
    %v606 = vsel %vm410, %v198, %v598
    %v607 = vsel %vm489, %v606, %v601
    %v608 = vsel %vm594, %v607, %v604
    %609 = vrot.lane.b32.xlu0 %v198, 112
    %v610 = vpop.permute.xlu0 %609
    %v612 = vsel %vm410, %v610, %v198
    %v613 = vsel %vm489, %v612, %v598
    %v614 = vsel %vm594, %v613, %v601
    %v615 = vmul.f32 %v614, 2.0
    %v616 = vmul.f32 %v615, 1.442695
    %v617 = vpow.pop %v616
    %v618 = vsub.f32 %v595, %v392
    %v619 = vmul.f32 %v618, %v618
    %621 = vrot.lane.b32.xlu0 %v397, 64
    %v622 = vpop.permute.xlu0 %621
    %v624 = vmul.f32 %v619, %v622
    %v625 = vmul.f32 %v392, 2.0
    %627 = vrot.lane.b32.xlu0 %v625, 64
    %v628 = vpop.permute.xlu0 %627
    %v630 = vadd.f32 %v624, %v628
    %v631 = vmul.f32 %v617, %v622
    %v632 = vsub.f32 %v631, 1.0
    %v633 = vsub.f32 %v632, %v615
    %v634 = vadd.f32 %v633, %v628
    %v635 = vsub.f32 %v608, %v392
    %v636 = vmul.f32 %v635, %v635
    %v637 = vmul.f32 %v636, %v622
    %v638 = vadd.f32 %v634, %v637
    %v639 = vld [vmem:[#allocation2 + $0x138] sm:$0xff]
    %v640 = vld [vmem:[#allocation2 + $0x140] sm:$0xff]
    %v641 = vld [vmem:[#allocation2 + $0x148] sm:$0xff]
    %v642 = vld [vmem:[#allocation2 + $0x150] sm:$0xff]
    %v643 = vld [vmem:[#allocation2 + $0x158] sm:$0xff]
    %v644 = vld [vmem:[#allocation2 + $0x160] sm:$0xff]
    %v645 = vld [vmem:[#allocation2 + $0x168] sm:$0xff]
    %v646 = vld [vmem:[#allocation2 + $0x170] sm:$0xff]
    %v647 = vld [vmem:[#allocation2 + $0x178] sm:$0xff]
    %v648 = vld [vmem:[#allocation2 + $0x180] sm:$0xff]
    %v649 = vld [vmem:[#allocation2 + $0x188] sm:$0xff]
    %v650 = vld [vmem:[#allocation2 + $0x190] sm:$0xff]
    %v651 = vld [vmem:[#allocation2 + $0x198] sm:$0xff]
    %v652 = vld [vmem:[#allocation2 + $0x1a0] sm:$0xff]
    %v653 = vld [vmem:[#allocation2 + $0x1a8] sm:$0xff]
    %v654 = vld [vmem:[#allocation2 + $0x1b0] sm:$0xff]
    %656 = vrot.lane.b32.xlu0 %v638, 64
    %v657 = vpop.permute.xlu0 %656
    %v659 = vsel %vm40, %v630, %v657
    %660 = vmatprep.subr.mxu0 0.0
    %661 = vmatpush1.msra.mxu0 %v654
    %662 = vmatprep.subr.mxu0 0.0
    %663 = vmatpush1.msra.mxu0 %v653
    %664 = vmatprep.subr.mxu0 0.0
    %665 = vmatpush1.msra.mxu0 %v652
    %666 = vmatprep.subr.mxu0 0.0
    %667 = vmatpush1.msra.mxu0 %v651
    %668 = vmatprep.subr.mxu0 0.0
    %669 = vmatpush1.msra.mxu0 %v650
    %670 = vmatprep.subr.mxu0 0.0
    %671 = vmatpush1.msra.mxu0 %v649
    %672 = vmatprep.subr.mxu0 0.0
    %673 = vmatpush1.msra.mxu0 %v648
    %674 = vmatprep.subr.mxu0 0.0
    %675 = vmatpush1.msra.mxu0 %v647
    %676 = vmatprep.subr.mxu0 0.0
    %677 = vmatpush1.msra.mxu0 %v646
    %678 = vmatprep.subr.mxu0 0.0
    %679 = vmatpush1.msra.mxu0 %v645
    %680 = vmatprep.subr.mxu0 0.0
    %681 = vmatpush1.msra.mxu0 %v644
    %682 = vmatprep.subr.mxu0 0.0
    %683 = vmatpush1.msra.mxu0 %v643
    %684 = vmatprep.subr.mxu0 0.0
    %685 = vmatpush1.msra.mxu0 %v642
    %686 = vmatprep.subr.mxu0 0.0
    %687 = vmatpush1.msra.mxu0 %v641
    %688 = vmatprep.subr.mxu0 0.0
    %689 = vmatpush1.msra.mxu0 %v640
    %690 = vmatprep.subr.mxu0 0.0
    %691 = vmatpush1.msra.mxu0 %v639
    %692 = vmatprep.subr.mxu0 0.0
    %693 = vmatpush2.msra.mxu0 0.0
    %694 = vmatprep.subr.mxu0 0.0
    %695 = vmatpush2.msra.mxu0 0.0
    %696 = vmatprep.subr.mxu0 0.0
    %697 = vmatpush2.msra.mxu0 0.0
    %698 = vmatprep.subr.mxu0 0.0
    %699 = vmatpush2.msra.mxu0 0.0
    %700 = vmatprep.subr.mxu0 0.0
    %701 = vmatpush2.msra.mxu0 0.0
    %702 = vmatprep.subr.mxu0 0.0
    %703 = vmatpush2.msra.mxu0 0.0
    %704 = vmatprep.subr.mxu0 0.0
    %705 = vmatpush2.msra.mxu0 0.0
    %706 = vmatprep.subr.mxu0 0.0
    %707 = vmatpush2.msra.mxu0 0.0
    %708 = vmatprep.subr.mxu0 0.0
    %709 = vmatpush2.msra.mxu0 0.0
    %710 = vmatprep.subr.mxu0 0.0
    %711 = vmatpush2.msra.mxu0 0.0
    %712 = vmatprep.subr.mxu0 0.0
    %713 = vmatpush2.msra.mxu0 0.0
    %714 = vmatprep.subr.mxu0 0.0
    %715 = vmatpush2.msra.mxu0 0.0
    %716 = vmatprep.subr.mxu0 0.0
    %717 = vmatpush2.msra.mxu0 0.0
    %718 = vmatprep.subr.mxu0 0.0
    %719 = vmatpush2.msra.mxu0 0.0
    %720 = vmatprep.subr.mxu0 0.0
    %721 = vmatpush2.msra.mxu0 0.0
    %722 = vmatprep.subr.mxu0 0.0
    %723 = vmatpush2.msra.mxu0 0.0
    %724 = vmatprep.mubr.f32.mxu0 0.0
    %725 = vmatmul.mubr.f32.gmra.mxu0 %v659
    %v726 = vpop.f32.mrf.mxu0
    %v727 = vadd.f32 0.0, %v726
    %v728 = vpop.f32.mrf.mxu0
    %729 = vdwg.mxu0
    %v730 = vmul.f32 %v727, -0.5
    %v731 = vmul.f32 %v727, 0.5
    %vm732 = vcmask 31744
    %v733 = vsel %vm732, %v730, -inf
    %734 = vmax.xlane.f32.xlu0 %v733
    %v735 = vpop.xlane.xlu0 %734
    %v736 = vsub.f32 %v730, %v735
    %v737 = vmul.f32 %v736, 1.442695
    %v738 = vpow.pop %v737
    %v739 = vsel %vm732, %v738, 0.0
    %740 = vadd.xlane.f32.xlu0 %v739
    %v741 = vpop.xlane.xlu0 %740
    %v742 = vrcp.pop %v741
    %v743 = vmul.f32 %v738, %v742
    %v744 = vadd.f32 %v743, 1e-10
    %v745 = vlog2.pop %v744
    %v746 = vmul.f32 %v745, 0.6931472
    %v747 = vadd.f32 %v746, 1.3862944
    %v748 = vmul.f32 %v743, %v747
    %v749 = vsel %vm732, %v748, 0.0
    %750 = vadd.xlane.f32.xlu0 %v749
    %v751 = vpop.xlane.xlu0 %750
    %v752 = vsub.f32 0.0, %v198
    %v753 = vmul.f32 %v198, 2.0
    %v754 = vmul.f32 %v753, 1.442695
    %v755 = vpow.pop %v754
    %v756 = vmul.f32 %v198, %v198
    %758 = vrot.lane.b32.xlu0 %v756, 8
    %v759 = vpop.permute.xlu0 %758
    %v761 = vadd.f32 %v755, %v759
    %v762 = vsub.f32 %v761, 1.0
    %v763 = vmul.f32 %v762, 0.5
    %v764 = vadd.f32 %v752, %v763
    %766 = vrot.lane.b32.xlu0 %v764, 88
    %v767 = vpop.permute.xlu0 %766
    %v769 = vsel %vm230, %v767, 0.0
    %770 = vadd.xlane.f32.xlu0 %v769
    %v771 = vpop.xlane.xlu0 %770
    %773 = vrot.lane.b32.xlu0 %v743, 4
    %v774 = vpop.permute.xlu0 %773
    %v776 = vmul.f32 %v731, %v774
    %778 = vrot.lane.b32.xlu0 %v776, 124
    %v779 = vpop.permute.xlu0 %778
    %v781 = vsel %vm732, %v779, 0.0
    %782 = vadd.xlane.f32.xlu0 %v781
    %v783 = vpop.xlane.xlu0 %782
    %v784 = vadd.f32 %v582, %v751
    %v785 = vadd.f32 %v784, %v783
    %v786 = vadd.f32 %v785, %v771
    %vm787 = vcmask 7168
    %v788 = vsel %vm787, %v786, 0.0
    %789 = vadd.xlane.f32.xlu0 %v788
    %v790 = vpop.xlane.xlu0 %789
    %v791 = vrot.slane %v790, 4
    %v792 = vadd.f32 %v790, %v791
    %v793 = vrot.slane %v792, 2
    %v794 = vadd.f32 %v792, %v793
    %v795 = vrot.slane %v794, 1
    %v796 = vadd.f32 %v794, %v795
    %s797 = vtos %v796
    %v798 = vrcp.pop 8.0
    %s799 = vtos %v798
    %s800 = smul.f32 %s797, %s799
    %v801 = vstv %s800
    %802 = vst [vmem:[#allocation5] sm:$0x1] %v801
    // Predicated region
    $region14: #{gmvae_elbo.1} parent=1 // pred_check
      _
    $region15: #{gmvae_elbo.1} parent=1 // pred_check_branch
      %804 = sbr.rel (0) target = $region17
    $region16: #{gmvae_elbo.1} parent=1 // pred_region
      %s806 = ssub.s32 16, 16
      %807 = vsyncadd [#allocation4], %s806
      %s809 = sshll.u32 [#allocation5], 4
      %s810 = int_to_ptr.vmem [resolvable:$true] %s809
      %812 = dma.vmem_to_hbm [thread:$0]  %s810, 16, %s2, [#allocation4]
    $region17: #{gmvae_elbo.1} parent=1 // pred_fallthru
      _
    // Predicated region
    $region18: #{gmvae_elbo.1} parent=1 // pred_check
      _
    $region19: #{gmvae_elbo.1} parent=1 // pred_check_branch
      %814 = sbr.rel (0) target = $region21
    $region20: #{gmvae_elbo.1} parent=1 // pred_region
      %815 = dma.done [#allocation4], 16
    $region21: #{gmvae_elbo.1} parent=1 // pred_fallthru
      _
    %816 = vsyncpa [#allocation3], 1
    %817 = vsyncpa [#allocation4], 1

</llo_original>
